<compile_context>
chip_gen: v6e
topology: v6e:2x2x1
jax: 0.10.0
libtpu: 0.0.40
codegen_flags: <defaults>
</compile_context>

<pallas_src>
import functools

import jax
import jax.numpy as jnp
from jax.experimental import pallas as pl
from jax.experimental.pallas import tpu as pltpu


def _round_up(x, m):
    return (x + m - 1) // m * m


def _focal_partial_kernel(x_ref, t_ref, psum_ref, *, block_rows, valid_rows,
                          need_row_mask):
    """One grid step: partial sum of stable BCE-with-logits over this row-block.

    Writes a full (8,128) output tile (unmasked store) whose element [0,0]
    holds the block's partial sum; the rest is zero.
    """
    x = x_ref[...].astype(jnp.float32)
    t = t_ref[...].astype(jnp.float32)

    # Numerically stable elementwise BCE-with-logits (matches torch).
    bce = jnp.maximum(x, 0.0) - x * t + jnp.log1p(jnp.exp(-jnp.abs(x)))

    if need_row_mask:
        # Zero out contributions from zero-padded rows (exact correction).
        row0 = pl.program_id(0) * block_rows
        rows = jax.lax.broadcasted_iota(jnp.int32, bce.shape, 0) + row0
        bce = jnp.where(rows < valid_rows, bce, 0.0)

    s = jnp.sum(bce)  # block-local reduction (cost hidden under the block DMA)

    r = jax.lax.broadcasted_iota(jnp.int32, (8, 128), 0)
    c = jax.lax.broadcasted_iota(jnp.int32, (8, 128), 1)
    psum_ref[0] = jnp.where((r == 0) & (c == 0), s, 0.0)


def focal_loss_logits(inputs, targets, *, alpha=1.0, gamma=2.0, block_rows=None):
    """Pallas implementation of FocalLossLogits.forward. Returns an f32 scalar."""
    assert inputs.shape == targets.shape
    if inputs.ndim == 1:
        inputs = inputs[None, :]
        targets = targets[None, :]
    elif inputs.ndim > 2:
        inputs = inputs.reshape(-1, inputs.shape[-1])
        targets = targets.reshape(-1, targets.shape[-1])
    B, L = inputs.shape
    n_elems = B * L

    # Row alignment respects sub-32-bit sublane packing (8 rows f32, 16 bf16, 32 int8).
    itemsize = min(jnp.dtype(inputs.dtype).itemsize, jnp.dtype(targets.dtype).itemsize)
    row_align = 8 * max(1, 4 // max(int(itemsize), 1))

    if block_rows is None:
        # Aim for ~2 MiB (f32-equivalent) per input per block: big enough to be at
        # the HBM roofline, small enough (2 inputs x 2 buffers = ~8 MiB) for every
        # generation's scoped VMEM, including v7x's 64 MiB physical VMEM.
        target_bytes = 2 * 1024 * 1024
        block_rows = max(row_align,
                         (target_bytes // (L * 4)) // row_align * row_align)
        block_rows = min(block_rows, 2048)
    block_rows = _round_up(max(block_rows, row_align), row_align)
    block_rows = min(block_rows, _round_up(B, row_align))

    B_pad = _round_up(B, block_rows)
    num_blocks = B_pad // block_rows

    if B_pad != B:
        pad = ((0, B_pad - B), (0, 0))
        inputs = jnp.pad(inputs, pad)
        targets = jnp.pad(targets, pad)

    kernel = functools.partial(
        _focal_partial_kernel,
        block_rows=block_rows,
        valid_rows=B,
        need_row_mask=(B_pad != B),
    )

    psum = pl.pallas_call(
        kernel,
        out_shape=jax.ShapeDtypeStruct((num_blocks, 8, 128), jnp.float32),
        grid_spec=pltpu.PrefetchScalarGridSpec(
            num_scalar_prefetch=0,
            grid=(num_blocks,),
            in_specs=[
                pl.BlockSpec((block_rows, L), lambda i: (i, 0)),
                pl.BlockSpec((block_rows, L), lambda i: (i, 0)),
            ],
            # Each step writes its own (1,8,128) partial-sum tile -> axis is parallel.
            out_specs=pl.BlockSpec((1, 8, 128), lambda i: (i, 0, 0)),
        ),
        compiler_params=pltpu.CompilerParams(
            dimension_semantics=("parallel",),
            vmem_limit_bytes=48 << 20,
        ),
    )(inputs, targets)

    # Tiny finalization in plain JAX: global mean -> focal transform.
    total = jnp.sum(psum)
    mean_bce = total / jnp.float32(n_elems)
    pt = jnp.exp(-mean_bce)
    return jnp.float32(alpha) * (1.0 - pt) ** jnp.float32(gamma) * mean_bce


def _focal_loss_ref(inputs, targets, alpha=1.0, gamma=2.0):
    x = inputs.astype(jnp.float32)
    t = targets.astype(jnp.float32)
    bce = jnp.mean(jnp.maximum(x, 0.0) - x * t + jnp.log1p(jnp.exp(-jnp.abs(x))))
    pt = jnp.exp(-bce)
    return alpha * (1.0 - pt) ** gamma * bce


if __name__ == "__main__":
    key = jax.random.PRNGKey(0)
    k_logits, k_targets = jax.random.split(key)

    # Multilabel classification: (batch, num_labels) logits and {0,1} targets.
    B, L = 16, 256
    logits = jax.random.normal(k_logits, (B, L), dtype=jnp.float32)
    targets = jax.random.bernoulli(k_targets, p=0.3, shape=(B, L)).astype(jnp.float32)

    loss = jax.block_until_ready(focal_loss_logits(logits, targets, alpha=1.0, gamma=2.0))
    ref = jax.block_until_ready(_focal_loss_ref(logits, targets, 1.0, 2.0))
    assert jnp.allclose(loss, ref, rtol=1e-5, atol=1e-6), (loss, ref)

    # Exercise the row-padding / masking path (batch not a multiple of 8).
    B2 = 13
    logits2 = jax.random.normal(k_logits, (B2, L), dtype=jnp.float32)
    targets2 = jax.random.bernoulli(k_targets, p=0.3, shape=(B2, L)).astype(jnp.float32)
    loss2 = jax.block_until_ready(focal_loss_logits(logits2, targets2, alpha=1.0, gamma=2.0))
    ref2 = jax.block_until_ready(_focal_loss_ref(logits2, targets2, 1.0, 2.0))
    assert jnp.allclose(loss2, ref2, rtol=1e-5, atol=1e-6), (loss2, ref2)

    print("KERNEL_OK")
</pallas_src>

<mosaic_0001>
module attributes {stable_mosaic.version = 11 : i64} {
  func.func @_focal_partial_kernel(%arg0: i32, %arg1: memref<16x256xf32, #tpu.memory_space<vmem>>, %arg2: memref<16x256xf32, #tpu.memory_space<vmem>>, %arg3: memref<1x8x128xf32, #tpu.memory_space<vmem>>) attributes {dimension_semantics = [#tpu.dimension_semantics<parallel>], iteration_bounds = array<i64: 1>, scalar_prefetch = 0 : i64, scratch_operands = 0 : i64, tpu.core_type = #tpu.core_type<tc>, window_params = [{transform_indices = @transform_0, window_bounds = array<i64: 16, 256>}, {transform_indices = @transform_1, window_bounds = array<i64: 16, 256>}, {transform_indices = @transform_2, window_bounds = array<i64: 1, 8, 128>}]} {
    %c0 = arith.constant 0 : index
    %c0_0 = arith.constant 0 : index
    %0 = vector.load %arg1[%c0, %c0_0] : memref<16x256xf32, #tpu.memory_space<vmem>>, vector<16x256xf32>
    %c0_1 = arith.constant 0 : index
    %c0_2 = arith.constant 0 : index
    %1 = vector.load %arg2[%c0_1, %c0_2] : memref<16x256xf32, #tpu.memory_space<vmem>>, vector<16x256xf32>
    %cst = arith.constant 0.000000e+00 : f32
    %2 = vector.broadcast %cst : f32 to vector<16x256xf32>
    %3 = arith.maximumf %0, %2 : vector<16x256xf32>
    %4 = arith.mulf %0, %1 : vector<16x256xf32>
    %5 = arith.subf %3, %4 : vector<16x256xf32>
    %6 = math.absf %0 : vector<16x256xf32>
    %cst_3 = arith.constant 0.000000e+00 : f32
    %7 = vector.broadcast %cst_3 : f32 to vector<16x256xf32>
    %8 = arith.subf %7, %6 : vector<16x256xf32>
    %9 = math.exp %8 : vector<16x256xf32>
    %10 = math.log1p %9 : vector<16x256xf32>
    %11 = arith.addf %5, %10 : vector<16x256xf32>
    %12 = vector.shape_cast %11 : vector<16x256xf32> to vector<1x16x256xf32>
    %cst_4 = arith.constant dense<0.000000e+00> : vector<1xf32>
    %13 = vector.multi_reduction <add>, %12, %cst_4 [1, 2] : vector<1x16x256xf32> to vector<1xf32>
    %14 = vector.shape_cast %13 : vector<1xf32> to vector<1x1x1xf32>
    %15 = vector.extract %14[0, 0, 0] : f32 from vector<1x1x1xf32>
    %16 = tpu.iota {dimensions = array<i32: 0>} : vector<8x128xi32>
    %17 = tpu.iota {dimensions = array<i32: 1>} : vector<8x128xi32>
    %c0_i32 = arith.constant 0 : i32
    %18 = vector.broadcast %c0_i32 : i32 to vector<8x128xi32>
    %19 = arith.cmpi eq, %16, %18 : vector<8x128xi32>
    %c0_i32_5 = arith.constant 0 : i32
    %20 = vector.broadcast %c0_i32_5 : i32 to vector<8x128xi32>
    %21 = arith.cmpi eq, %17, %20 : vector<8x128xi32>
    %22 = arith.andi %19, %21 : vector<8x128xi1>
    %cst_6 = arith.constant 0.000000e+00 : f32
    %23 = vector.broadcast %15 : f32 to vector<8x128xf32>
    %24 = vector.broadcast %cst_6 : f32 to vector<8x128xf32>
    %25 = arith.select %22, %23, %24 : vector<8x128xi1>, vector<8x128xf32>
    %c0_7 = arith.constant 0 : index
    %c0_8 = arith.constant 0 : index
    %c0_9 = arith.constant 0 : index
    %26 = vector.load %arg3[%c0_7, %c0_8, %c0_9] : memref<1x8x128xf32, #tpu.memory_space<vmem>>, vector<1x8x128xf32>
    %27 = vector.shape_cast %26 : vector<1x8x128xf32> to vector<8x128xf32>
    %28 = vector.shape_cast %25 : vector<8x128xf32> to vector<1x8x128xf32>
    tpu.vector_store %arg3[%c0_7, %c0_8, %c0_9], %28 {strides = array<i32>} : memref<1x8x128xf32, #tpu.memory_space<vmem>>, vector<1x8x128xf32>,
    return
  }
  func.func @transform_0(%arg0: i32) -> (i32, i32) {
    %c0_i32 = arith.constant 0 : i32
    %c0_i32_0 = arith.constant 0 : i32
    return %arg0, %c0_i32 : i32, i32
  }
  func.func @transform_1(%arg0: i32) -> (i32, i32) {
    %c0_i32 = arith.constant 0 : i32
    %c0_i32_0 = arith.constant 0 : i32
    return %arg0, %c0_i32 : i32, i32
  }
  func.func @transform_2(%arg0: i32) -> (i32, i32, i32) {
    %c0_i32 = arith.constant 0 : i32
    %c0_i32_0 = arith.constant 0 : i32
    %c0_i32_1 = arith.constant 0 : i32
    return %arg0, %c0_i32, %c0_i32_0 : i32, i32, i32
  }
}

</mosaic_0001>

<llo_original>
// kernel: tpu_custom_call.1
$region0: #{tpu_custom_call.1}
  #allocation0 [shape = 'u32[]', space=smem, size = 0x4, offset = 0x4, fixed_abs, tag = 'smem constant byte address 0x4 - core index']
  #allocation1 [shape = 'u32[144,128]{1,0:T(1,128)}', space=vmem, size = 0x12000, scoped, tag = 'internal scratch']
  %s0 = inlined_call_operand.hbm [shape: f32[16,256], index: 0, kind: input, shape index: {}]
  %s1 = inlined_call_operand.hbm [shape: f32[16,256], index: 1, kind: input, shape index: {}]
  %s2 = inlined_call_operand.hbm [shape: f32[1,8,128], index: 2, kind: output, shape index: {}]
  %s3 = sld [smem:[#allocation0]]
  $region26: #{tpu_custom_call.1} parent=0
    _
  %s5 = ssub.s32 1, %s3
  %s6 = scalar_select 0, %s5, %s3
  $region1: #{tpu_custom_call.1} parent=0
    #allocation2 [shape = 'u8[16384]{0}', space=vmem, size = 0x4000, scoped, tag = 'input window, operand 0, single buffered']
    #allocation3 [shape = 's32[1]{0}', space=sflag, size = 0x4, scoped, tag = 'scoped memory for tpu_custom_call.1']
    #allocation4 [shape = 's32[1]{0}', space=sflag, size = 0x4, scoped, tag = 'scoped memory for tpu_custom_call.1']
    #allocation5 [shape = 'u8[16384]{0}', space=vmem, size = 0x4000, scoped, tag = 'input window, operand 1, single buffered']
    #allocation6 [shape = 's32[1]{0}', space=sflag, size = 0x4, scoped, tag = 'scoped memory for tpu_custom_call.1']
    #allocation7 [shape = 'u8[4096]{0}', space=vmem, size = 0x1000, scoped, tag = 'output window, operand 0, single buffered']
    %7 = vsyncpa [#allocation3], 0
    %8 = vsyncpa [#allocation6], 0
    %9 = vsyncpa [#allocation4], 0
    // Predicated region
    $region2: #{tpu_custom_call.1} parent=1 // pred_check
      _
    $region3: #{tpu_custom_call.1} parent=1 // pred_check_branch
      %11 = sbr.rel (0) target = $region5
    $region4: #{tpu_custom_call.1} parent=1 // pred_region
      %s13 = ssub.s32 512, 512
      %14 = vsyncadd [#allocation3], %s13
      %s15 = sshll.u32 [#allocation2], 4
      %s16 = int_to_ptr.vmem [resolvable:$true] %s15
      %21 = dma.hbm_to_vmem [thread:$0]  %s0, 512, %s16, [#allocation3], 256, 256, 16
    $region5: #{tpu_custom_call.1} parent=1 // pred_fallthru
      _
    // Predicated region
    $region6: #{tpu_custom_call.1} parent=1 // pred_check
      _
    $region7: #{tpu_custom_call.1} parent=1 // pred_check_branch
      %23 = sbr.rel (0) target = $region9
    $region8: #{tpu_custom_call.1} parent=1 // pred_region
      %s25 = ssub.s32 512, 512
      %26 = vsyncadd [#allocation6], %s25
      %s27 = sshll.u32 [#allocation5], 4
      %s28 = int_to_ptr.vmem [resolvable:$true] %s27
      %33 = dma.hbm_to_vmem [thread:$0]  %s1, 512, %s28, [#allocation6], 256, 256, 16
    $region9: #{tpu_custom_call.1} parent=1 // pred_fallthru
      _
    // Predicated region
    $region10: #{tpu_custom_call.1} parent=1 // pred_check
      _
    $region11: #{tpu_custom_call.1} parent=1 // pred_check_branch
      %35 = sbr.rel (0) target = $region13
    $region12: #{tpu_custom_call.1} parent=1 // pred_region
      %36 = dma.done [#allocation3], 512
    $region13: #{tpu_custom_call.1} parent=1 // pred_fallthru
      _
    // Predicated region
    $region14: #{tpu_custom_call.1} parent=1 // pred_check
      _
    $region15: #{tpu_custom_call.1} parent=1 // pred_check_branch
      %38 = sbr.rel (0) target = $region17
    $region16: #{tpu_custom_call.1} parent=1 // pred_region
      %39 = dma.done [#allocation6], 512
    $region17: #{tpu_custom_call.1} parent=1 // pred_fallthru
      _
    %v40 = vld [vmem:[#allocation2] sm:$0xff]
    %v41 = vld [vmem:[#allocation2 + $0x8] sm:$0xff]
    %v42 = vld [vmem:[#allocation2 + $0x10] sm:$0xff]
    %v43 = vld [vmem:[#allocation2 + $0x18] sm:$0xff]
    %v44 = vld [vmem:[#allocation5] sm:$0xff]
    %v45 = vld [vmem:[#allocation5 + $0x8] sm:$0xff]
    %v46 = vld [vmem:[#allocation5 + $0x10] sm:$0xff]
    %v47 = vld [vmem:[#allocation5 + $0x18] sm:$0xff]
    %v48 = vmax.f32 %v40, 0.0
    %v49 = vmax.f32 %v41, 0.0
    %v50 = vmax.f32 %v42, 0.0
    %v51 = vmax.f32 %v43, 0.0
    %v52 = vmul.f32 %v40, %v44
    %v53 = vmul.f32 %v41, %v45
    %v54 = vmul.f32 %v42, %v46
    %v55 = vmul.f32 %v43, %v47
    %v56 = vsub.f32 %v48, %v52
    %v57 = vsub.f32 %v49, %v53
    %v58 = vsub.f32 %v50, %v54
    %v59 = vsub.f32 %v51, %v55
    %v60 = vand.u32 2147483647, %v40
    %v61 = vand.u32 2147483647, %v41
    %v62 = vand.u32 2147483647, %v42
    %v63 = vand.u32 2147483647, %v43
    %v64 = vsub.f32 0.0, %v60
    %v65 = vsub.f32 0.0, %v61
    %v66 = vsub.f32 0.0, %v62
    %v67 = vsub.f32 0.0, %v63
    %v68 = vmul.f32 %v64, 1.442695
    %v69 = vpow.pop %v68
    %v70 = vmul.f32 %v65, 1.442695
    %v71 = vpow.pop %v70
    %v72 = vmul.f32 %v66, 1.442695
    %v73 = vpow.pop %v72
    %v74 = vmul.f32 %v67, 1.442695
    %v75 = vpow.pop %v74
    %v76 = vadd.f32 %v69, 1.0
    %v77 = vlog2.pop %v76
    %v78 = vmul.f32 %v77, 0.6931472
    %v79 = vmul.f32 -0.5, %v69
    %v80 = vadd.f32 %v79, 1.0
    %v81 = vmul.f32 %v80, %v69
    %v82 = vand.u32 2147483647, %v69
    %vm83 = vcmp.lt.f32.partialorder %v82, 0.0004427343
    %v84 = vsel %vm83, %v81, %v78
    %v85 = vadd.f32 %v71, 1.0
    %v86 = vlog2.pop %v85
    %v87 = vmul.f32 %v86, 0.6931472
    %v88 = vmul.f32 -0.5, %v71
    %v89 = vadd.f32 %v88, 1.0
    %v90 = vmul.f32 %v89, %v71
    %v91 = vand.u32 2147483647, %v71
    %vm92 = vcmp.lt.f32.partialorder %v91, 0.0004427343
    %v93 = vsel %vm92, %v90, %v87
    %v94 = vadd.f32 %v73, 1.0
    %v95 = vlog2.pop %v94
    %v96 = vmul.f32 %v95, 0.6931472
    %v97 = vmul.f32 -0.5, %v73
    %v98 = vadd.f32 %v97, 1.0
    %v99 = vmul.f32 %v98, %v73
    %v100 = vand.u32 2147483647, %v73
    %vm101 = vcmp.lt.f32.partialorder %v100, 0.0004427343
    %v102 = vsel %vm101, %v99, %v96
    %v103 = vadd.f32 %v75, 1.0
    %v104 = vlog2.pop %v103
    %v105 = vmul.f32 %v104, 0.6931472
    %v106 = vmul.f32 -0.5, %v75
    %v107 = vadd.f32 %v106, 1.0
    %v108 = vmul.f32 %v107, %v75
    %v109 = vand.u32 2147483647, %v75
    %vm110 = vcmp.lt.f32.partialorder %v109, 0.0004427343
    %v111 = vsel %vm110, %v108, %v105
    %v112 = vadd.f32 %v56, %v84
    %v113 = vadd.f32 %v57, %v93
    %v114 = vadd.f32 %v58, %v102
    %v115 = vadd.f32 %v59, %v111
    %v116 = vadd.f32 %v112, %v113
    %v117 = vadd.f32 %v116, %v114
    %v118 = vadd.f32 %v117, %v115
    %119 = vadd.xlane.f32.xlu0 %v118
    %v120 = vpop.xlane.xlu0 %119
    %v121 = vrot.slane %v120, 4
    %v122 = vadd.f32 %v120, %v121
    %v123 = vrot.slane %v122, 2
    %v124 = vadd.f32 %v122, %v123
    %v125 = vrot.slane %v124, 1
    %v126 = vadd.f32 %v124, %v125
    %s127 = vtos %v126
    %v128 = vlaneseq
    %v129 = vshrl.u32 %v128, 7
    %v130 = vlaneseq
    %v131 = vand.u32 %v130, 127
    %vm132 = vcmp.eq.s32.totalorder %v129, 0
    %vm133 = vcmp.eq.s32.totalorder %v131, 0
    %vm134 = vmand %vm132, %vm133
    %v135 = vstv %s127
    %v136 = vsel %vm134, %v135, 0.0
    %137 = vst [vmem:[#allocation7] sm:$0xff] %v136
    // Predicated region
    $region18: #{tpu_custom_call.1} parent=1 // pred_check
      _
    $region19: #{tpu_custom_call.1} parent=1 // pred_check_branch
      %139 = sbr.rel (0) target = $region21
    $region20: #{tpu_custom_call.1} parent=1 // pred_region
      %s141 = ssub.s32 128, 128
      %142 = vsyncadd [#allocation4], %s141
      %s144 = sshll.u32 [#allocation7], 4
      %s145 = int_to_ptr.vmem [resolvable:$true] %s144
      %147 = dma.vmem_to_hbm [thread:$0]  %s145, 128, %s2, [#allocation4]
    $region21: #{tpu_custom_call.1} parent=1 // pred_fallthru
      _
    // Predicated region
    $region22: #{tpu_custom_call.1} parent=1 // pred_check
      _
    $region23: #{tpu_custom_call.1} parent=1 // pred_check_branch
      %149 = sbr.rel (0) target = $region25
    $region24: #{tpu_custom_call.1} parent=1 // pred_region
      %150 = dma.done [#allocation4], 128
    $region25: #{tpu_custom_call.1} parent=1 // pred_fallthru
      _
    %151 = vsyncpa [#allocation3], 1
    %152 = vsyncpa [#allocation6], 1
    %153 = vsyncpa [#allocation4], 1

</llo_original>
